<compile_context>
chip_gen: v6e
topology: v6e:2x2x1
jax: 0.10.0
libtpu: 0.0.40
codegen_flags: <defaults>
</compile_context>

<pallas_src>
import jax
import jax.numpy as jnp
import numpy as np
from jax.experimental import pallas as pl
from jax.experimental.pallas import tpu as pltpu

N_SLOTS = 8      # num_memory_slots
DIM_MEM = 32     # dim_memory
DIM_IN = 32      # dim_input
SHIFT_RADIUS = 1  # only affects the unused get_weighting path


# --------------------- fused read + write, T-step recurrent kernel ---------------------
def _ntm_head_seq_kernel(mem0_ref, w_ref, x_ref, wea_ref, bea_ref,
                         mem_out_ref, reads_ref, ea_ref):
    T, M = reads_ref.shape

    # Erase|add vectors for all T steps of this batch element: a single MXU matmul,
    # memory-independent, hoisted out of the recurrence.
    ea_ref[...] = (jnp.dot(x_ref[...], wea_ref[...],
                           preferred_element_type=jnp.float32) + bea_ref[...])

    # T-step NTM recurrence; the memory state never touches HBM inside the loop.
    # T is a small static constant -> fully unrolled straight-line code for the
    # LLO scheduler (do NOT hand-reorder: VPU/XLU work co-schedules with MXU drain).
    mem = mem0_ref[...]                                       # (N, M)
    for t in range(T):
        w_t = w_ref[t]                                        # (N, M): w broadcast over lanes
        # read head: read_t[m] = sum_n w_t[n] * mem[n, m]  (VPU mul + sublane reduce)
        reads_ref[pl.ds(t, 1), :] = jnp.sum(w_t * mem, axis=0, keepdims=True)
        ea_t = ea_ref[pl.ds(t, 1), :]                         # (1, 2M)
        erase_t = ea_t[:, :M]                                 # (1, M)
        add_t = ea_t[:, M:]                                   # (1, M)
        # write head: mem <- mem * (1 - w (outer) e) + w (outer) a
        mem = mem * (1.0 - w_t * erase_t) + w_t * add_t
    mem_out_ref[...] = mem


def make_ntm_head_seq(B, T, N, M, D):
    """Build the fused recurrent NTM head step.

    step(memory (B,N,M) f32, weighting (B,T,N) f32, xs (B,T,D) f32,
         w_ea (D,2M) f32, b_ea (1,2M) f32)
      -> (final_memory (B,N,M) f32, reads (B,T,M) f32)
    """
    grid_spec = pltpu.PrefetchScalarGridSpec(
        num_scalar_prefetch=0,
        grid=(B,),
        in_specs=[
            pl.BlockSpec((None, N, M), lambda b: (b, 0, 0)),         # initial memory
            pl.BlockSpec((None, T, N, M), lambda b: (b, 0, 0, 0)),   # weighting (pre-bcast)
            pl.BlockSpec((None, T, D), lambda b: (b, 0, 0)),         # controller inputs
            pl.BlockSpec((D, 2 * M), lambda b: (0, 0)),              # erase|add weight (resident)
            pl.BlockSpec((1, 2 * M), lambda b: (0, 0)),              # erase|add bias (resident)
        ],
        out_specs=(
            pl.BlockSpec((None, N, M), lambda b: (b, 0, 0)),         # final memory
            pl.BlockSpec((None, T, M), lambda b: (b, 0, 0)),         # per-step read vectors
        ),
        scratch_shapes=[pltpu.VMEM((T, 2 * M), jnp.float32)],        # erase|add for all steps
    )
    call = pl.pallas_call(
        _ntm_head_seq_kernel,
        grid_spec=grid_spec,
        out_shape=(jax.ShapeDtypeStruct((B, N, M), jnp.float32),
                   jax.ShapeDtypeStruct((B, T, M), jnp.float32)),
        compiler_params=pltpu.CompilerParams(dimension_semantics=("parallel",)),
    )

    @jax.jit
    def step(memory, weighting, xs, w_ea, b_ea):
        # Cold-path layout plumbing: broadcast w over the lane (memory) axis so the
        # kernel's read reduce and outer-product update need no transposes.
        w_bcast = jnp.broadcast_to(weighting[..., None].astype(jnp.float32), (B, T, N, M))
        return call(memory.astype(jnp.float32), w_bcast, xs.astype(jnp.float32),
                    w_ea.astype(jnp.float32), b_ea.astype(jnp.float32))

    return step


# ------------------------- one-time (cold path) parameter prep -------------------------
def prepare_write_params(w_erase, b_erase, w_add, b_add):
    """Concatenate the two nn.Linear(dim_input, dim_memory) heads into one (D, 2M)."""
    w_ea = jnp.concatenate([w_erase, w_add], axis=1).astype(jnp.float32)                  # (D, 2M)
    b_ea = jnp.concatenate([b_erase, b_add], axis=0).reshape(1, -1).astype(jnp.float32)   # (1, 2M)
    return w_ea, b_ea


if __name__ == "__main__":
    B, T = 4, 8
    key = jax.random.PRNGKey(0)
    k_mem, k_w, k_x, k_we, k_be, k_wa, k_ba = jax.random.split(key, 7)

    # Deterministic synthetic data / parameters.
    memory0 = jax.random.normal(k_mem, (B, N_SLOTS, DIM_MEM), jnp.float32)
    weighting = jax.nn.softmax(
        jax.random.normal(k_w, (B, T, N_SLOTS), jnp.float32), axis=-1)
    xs = jax.random.normal(k_x, (B, T, DIM_IN), jnp.float32)

    # nn.Linear(dim_input, dim_memory) params, stored PRE-TRANSPOSED as (in, out).
    w_erase = jax.random.normal(k_we, (DIM_IN, DIM_MEM), jnp.float32) * 0.1
    b_erase = jax.random.normal(k_be, (DIM_MEM,), jnp.float32) * 0.1
    w_add = jax.random.normal(k_wa, (DIM_IN, DIM_MEM), jnp.float32) * 0.1
    b_add = jax.random.normal(k_ba, (DIM_MEM,), jnp.float32) * 0.1

    w_ea, b_ea = prepare_write_params(w_erase, b_erase, w_add, b_add)

    # ---- fused recurrent read+write forward (one kernel launch for the whole sequence) ----
    step = make_ntm_head_seq(B, T, N_SLOTS, DIM_MEM, DIM_IN)
    mem_final, reads = step(memory0, weighting, xs, w_ea, b_ea)
    jax.block_until_ready((mem_final, reads))

    # ---- numpy reference (sequential, per batch element) ----
    mem_np = np.asarray(memory0)
    w_np = np.asarray(weighting)
    x_np = np.asarray(xs)
    we_np, be_np = np.asarray(w_erase), np.asarray(b_erase)
    wa_np, ba_np = np.asarray(w_add), np.asarray(b_add)

    reads_ref = np.zeros((B, T, DIM_MEM), np.float32)
    mem_final_ref = np.zeros_like(mem_np)
    for b in range(B):
        m = mem_np[b].copy()
        for t in range(T):
            w = w_np[b, t]                                  # (N,)
            reads_ref[b, t] = w @ m
            e = x_np[b, t] @ we_np + be_np
            a = x_np[b, t] @ wa_np + ba_np
            m = m * (1.0 - np.outer(w, e)) + np.outer(w, a)
        mem_final_ref[b] = m

    np.testing.assert_allclose(np.asarray(reads), reads_ref, rtol=1e-4, atol=1e-4)
    np.testing.assert_allclose(np.asarray(mem_final), mem_final_ref, rtol=1e-4, atol=1e-4)

    print("KERNEL_OK")
</pallas_src>

<mosaic_0001>
module attributes {stable_mosaic.version = 11 : i64} {
  func.func @_ntm_head_seq_kernel(%arg0: i32, %arg1: memref<1x8x32xf32, #tpu.memory_space<vmem>>, %arg2: memref<1x8x8x32xf32, #tpu.memory_space<vmem>>, %arg3: memref<1x8x32xf32, #tpu.memory_space<vmem>>, %arg4: memref<32x64xf32, #tpu.memory_space<vmem>>, %arg5: memref<1x64xf32, #tpu.memory_space<vmem>>, %arg6: memref<1x8x32xf32, #tpu.memory_space<vmem>>, %arg7: memref<1x8x32xf32, #tpu.memory_space<vmem>>, %arg8: memref<8x64xf32, #tpu.memory_space<vmem>>) attributes {dimension_semantics = [#tpu.dimension_semantics<parallel>], iteration_bounds = array<i64: 4>, scalar_prefetch = 0 : i64, scratch_operands = 1 : i64, tpu.core_type = #tpu.core_type<tc>, window_params = [{transform_indices = @transform_0, window_bounds = array<i64: 1, 8, 32>}, {transform_indices = @transform_1, window_bounds = array<i64: 1, 8, 8, 32>}, {transform_indices = @transform_2, window_bounds = array<i64: 1, 8, 32>}, {pipeline_mode = #tpu.pipeline_mode<synchronous>, transform_indices = @transform_3, window_bounds = array<i64: 32, 64>}, {pipeline_mode = #tpu.pipeline_mode<synchronous>, transform_indices = @transform_4, window_bounds = array<i64: 1, 64>}, {transform_indices = @transform_5, window_bounds = array<i64: 1, 8, 32>}, {transform_indices = @transform_6, window_bounds = array<i64: 1, 8, 32>}]} {
    %c0 = arith.constant 0 : index
    %c0_0 = arith.constant 0 : index
    %c0_1 = arith.constant 0 : index
    %0 = vector.load %arg3[%c0, %c0_0, %c0_1] : memref<1x8x32xf32, #tpu.memory_space<vmem>>, vector<1x8x32xf32>
    %1 = vector.shape_cast %0 : vector<1x8x32xf32> to vector<8x32xf32>
    %c0_2 = arith.constant 0 : index
    %c0_3 = arith.constant 0 : index
    %2 = vector.load %arg4[%c0_2, %c0_3] : memref<32x64xf32, #tpu.memory_space<vmem>>, vector<32x64xf32>
    %cst = arith.constant dense<0.000000e+00> : vector<8x64xf32>
    %3 = tpu.matmul %1, %2, %cst {dimension_numbers = #tpu.dot_dimension_numbers<[1], [0], [0], [1], [0, 0, 1, 1], [], []>} : vector<8x32xf32>, vector<32x64xf32>, vector<8x64xf32> -> vector<8x64xf32>
    %c0_4 = arith.constant 0 : index
    %c0_5 = arith.constant 0 : index
    %4 = vector.load %arg5[%c0_4, %c0_5] : memref<1x64xf32, #tpu.memory_space<vmem>>, vector<1x64xf32>
    %5 = vector.broadcast %4 : vector<1x64xf32> to vector<8x64xf32>
    %6 = arith.addf %3, %5 : vector<8x64xf32>
    %c0_6 = arith.constant 0 : index
    %c0_7 = arith.constant 0 : index
    %7 = vector.load %arg8[%c0_6, %c0_7] : memref<8x64xf32, #tpu.memory_space<vmem>>, vector<8x64xf32>
    tpu.vector_store %arg8[%c0_6, %c0_7], %6 {strides = array<i32>} : memref<8x64xf32, #tpu.memory_space<vmem>>, vector<8x64xf32>,
    %c0_8 = arith.constant 0 : index
    %c0_9 = arith.constant 0 : index
    %c0_10 = arith.constant 0 : index
    %8 = vector.load %arg1[%c0_8, %c0_9, %c0_10] : memref<1x8x32xf32, #tpu.memory_space<vmem>>, vector<1x8x32xf32>
    %9 = vector.shape_cast %8 : vector<1x8x32xf32> to vector<8x32xf32>
    %c0_11 = arith.constant 0 : index
    %c0_12 = arith.constant 0 : index
    %c0_13 = arith.constant 0 : index
    %c0_14 = arith.constant 0 : index
    %10 = vector.load %arg2[%c0_11, %c0_12, %c0_13, %c0_14] : memref<1x8x8x32xf32, #tpu.memory_space<vmem>>, vector<1x1x8x32xf32>
    %11 = vector.shape_cast %10 : vector<1x1x8x32xf32> to vector<8x32xf32>
    %12 = arith.mulf %11, %9 : vector<8x32xf32>
    %cst_15 = arith.constant dense<0.000000e+00> : vector<32xf32>
    %13 = vector.multi_reduction <add>, %12, %cst_15 [0] : vector<8x32xf32> to vector<32xf32>
    %14 = vector.shape_cast %13 : vector<32xf32> to vector<1x32xf32>
    %c0_16 = arith.constant 0 : index
    %c0_17 = arith.constant 0 : index
    %c0_18 = arith.constant 0 : index
    %15 = vector.load %arg7[%c0_16, %c0_17, %c0_18] : memref<1x8x32xf32, #tpu.memory_space<vmem>>, vector<1x1x32xf32>
    %16 = vector.shape_cast %15 : vector<1x1x32xf32> to vector<1x32xf32>
    %17 = vector.shape_cast %14 : vector<1x32xf32> to vector<1x1x32xf32>
    tpu.vector_store %arg7[%c0_16, %c0_17, %c0_18], %17 {strides = array<i32>} : memref<1x8x32xf32, #tpu.memory_space<vmem>>, vector<1x1x32xf32>,
    %c0_19 = arith.constant 0 : index
    %c0_20 = arith.constant 0 : index
    %18 = vector.load %arg8[%c0_19, %c0_20] : memref<8x64xf32, #tpu.memory_space<vmem>>, vector<1x64xf32>
    %19 = vector.extract_strided_slice %18 {offsets = [0, 0], sizes = [1, 32], strides = [1, 1]} : vector<1x64xf32> to vector<1x32xf32>
    %20 = vector.extract_strided_slice %18 {offsets = [0, 32], sizes = [1, 32], strides = [1, 1]} : vector<1x64xf32> to vector<1x32xf32>
    %21 = vector.broadcast %19 : vector<1x32xf32> to vector<8x32xf32>
    %22 = arith.mulf %11, %21 : vector<8x32xf32>
    %cst_21 = arith.constant 1.000000e+00 : f32
    %23 = vector.broadcast %cst_21 : f32 to vector<8x32xf32>
    %24 = arith.subf %23, %22 : vector<8x32xf32>
    %25 = arith.mulf %9, %24 : vector<8x32xf32>
    %26 = vector.broadcast %20 : vector<1x32xf32> to vector<8x32xf32>
    %27 = arith.mulf %11, %26 : vector<8x32xf32>
    %28 = arith.addf %25, %27 : vector<8x32xf32>
    %c0_22 = arith.constant 0 : index
    %c1 = arith.constant 1 : index
    %c0_23 = arith.constant 0 : index
    %c0_24 = arith.constant 0 : index
    %29 = vector.load %arg2[%c0_22, %c1, %c0_23, %c0_24] : memref<1x8x8x32xf32, #tpu.memory_space<vmem>>, vector<1x1x8x32xf32>
    %30 = vector.shape_cast %29 : vector<1x1x8x32xf32> to vector<8x32xf32>
    %31 = arith.mulf %30, %28 : vector<8x32xf32>
    %cst_25 = arith.constant dense<0.000000e+00> : vector<32xf32>
    %32 = vector.multi_reduction <add>, %31, %cst_25 [0] : vector<8x32xf32> to vector<32xf32>
    %33 = vector.shape_cast %32 : vector<32xf32> to vector<1x32xf32>
    %c0_26 = arith.constant 0 : index
    %c1_27 = arith.constant 1 : index
    %c0_28 = arith.constant 0 : index
    %34 = vector.load %arg7[%c0_26, %c1_27, %c0_28] : memref<1x8x32xf32, #tpu.memory_space<vmem>>, vector<1x1x32xf32>
    %35 = vector.shape_cast %34 : vector<1x1x32xf32> to vector<1x32xf32>
    %36 = vector.shape_cast %33 : vector<1x32xf32> to vector<1x1x32xf32>
    tpu.vector_store %arg7[%c0_26, %c1_27, %c0_28], %36 {strides = array<i32>} : memref<1x8x32xf32, #tpu.memory_space<vmem>>, vector<1x1x32xf32>,
    %c1_29 = arith.constant 1 : index
    %c0_30 = arith.constant 0 : index
    %37 = vector.load %arg8[%c1_29, %c0_30] : memref<8x64xf32, #tpu.memory_space<vmem>>, vector<1x64xf32>
    %38 = vector.extract_strided_slice %37 {offsets = [0, 0], sizes = [1, 32], strides = [1, 1]} : vector<1x64xf32> to vector<1x32xf32>
    %39 = vector.extract_strided_slice %37 {offsets = [0, 32], sizes = [1, 32], strides = [1, 1]} : vector<1x64xf32> to vector<1x32xf32>
    %40 = vector.broadcast %38 : vector<1x32xf32> to vector<8x32xf32>
    %41 = arith.mulf %30, %40 : vector<8x32xf32>
    %cst_31 = arith.constant 1.000000e+00 : f32
    %42 = vector.broadcast %cst_31 : f32 to vector<8x32xf32>
    %43 = arith.subf %42, %41 : vector<8x32xf32>
    %44 = arith.mulf %28, %43 : vector<8x32xf32>
    %45 = vector.broadcast %39 : vector<1x32xf32> to vector<8x32xf32>
    %46 = arith.mulf %30, %45 : vector<8x32xf32>
    %47 = arith.addf %44, %46 : vector<8x32xf32>
    %c0_32 = arith.constant 0 : index
    %c2 = arith.constant 2 : index
    %c0_33 = arith.constant 0 : index
    %c0_34 = arith.constant 0 : index
    %48 = vector.load %arg2[%c0_32, %c2, %c0_33, %c0_34] : memref<1x8x8x32xf32, #tpu.memory_space<vmem>>, vector<1x1x8x32xf32>
    %49 = vector.shape_cast %48 : vector<1x1x8x32xf32> to vector<8x32xf32>
    %50 = arith.mulf %49, %47 : vector<8x32xf32>
    %cst_35 = arith.constant dense<0.000000e+00> : vector<32xf32>
    %51 = vector.multi_reduction <add>, %50, %cst_35 [0] : vector<8x32xf32> to vector<32xf32>
    %52 = vector.shape_cast %51 : vector<32xf32> to vector<1x32xf32>
    %c0_36 = arith.constant 0 : index
    %c2_37 = arith.constant 2 : index
    %c0_38 = arith.constant 0 : index
    %53 = vector.load %arg7[%c0_36, %c2_37, %c0_38] : memref<1x8x32xf32, #tpu.memory_space<vmem>>, vector<1x1x32xf32>
    %54 = vector.shape_cast %53 : vector<1x1x32xf32> to vector<1x32xf32>
    %55 = vector.shape_cast %52 : vector<1x32xf32> to vector<1x1x32xf32>
    tpu.vector_store %arg7[%c0_36, %c2_37, %c0_38], %55 {strides = array<i32>} : memref<1x8x32xf32, #tpu.memory_space<vmem>>, vector<1x1x32xf32>,
    %c2_39 = arith.constant 2 : index
    %c0_40 = arith.constant 0 : index
    %56 = vector.load %arg8[%c2_39, %c0_40] : memref<8x64xf32, #tpu.memory_space<vmem>>, vector<1x64xf32>
    %57 = vector.extract_strided_slice %56 {offsets = [0, 0], sizes = [1, 32], strides = [1, 1]} : vector<1x64xf32> to vector<1x32xf32>
    %58 = vector.extract_strided_slice %56 {offsets = [0, 32], sizes = [1, 32], strides = [1, 1]} : vector<1x64xf32> to vector<1x32xf32>
    %59 = vector.broadcast %57 : vector<1x32xf32> to vector<8x32xf32>
    %60 = arith.mulf %49, %59 : vector<8x32xf32>
    %cst_41 = arith.constant 1.000000e+00 : f32
    %61 = vector.broadcast %cst_41 : f32 to vector<8x32xf32>
    %62 = arith.subf %61, %60 : vector<8x32xf32>
    %63 = arith.mulf %47, %62 : vector<8x32xf32>
    %64 = vector.broadcast %58 : vector<1x32xf32> to vector<8x32xf32>
    %65 = arith.mulf %49, %64 : vector<8x32xf32>
    %66 = arith.addf %63, %65 : vector<8x32xf32>
    %c0_42 = arith.constant 0 : index
    %c3 = arith.constant 3 : index
    %c0_43 = arith.constant 0 : index
    %c0_44 = arith.constant 0 : index
    %67 = vector.load %arg2[%c0_42, %c3, %c0_43, %c0_44] : memref<1x8x8x32xf32, #tpu.memory_space<vmem>>, vector<1x1x8x32xf32>
    %68 = vector.shape_cast %67 : vector<1x1x8x32xf32> to vector<8x32xf32>
    %69 = arith.mulf %68, %66 : vector<8x32xf32>
    %cst_45 = arith.constant dense<0.000000e+00> : vector<32xf32>
    %70 = vector.multi_reduction <add>, %69, %cst_45 [0] : vector<8x32xf32> to vector<32xf32>
    %71 = vector.shape_cast %70 : vector<32xf32> to vector<1x32xf32>
    %c0_46 = arith.constant 0 : index
    %c3_47 = arith.constant 3 : index
    %c0_48 = arith.constant 0 : index
    %72 = vector.load %arg7[%c0_46, %c3_47, %c0_48] : memref<1x8x32xf32, #tpu.memory_space<vmem>>, vector<1x1x32xf32>
    %73 = vector.shape_cast %72 : vector<1x1x32xf32> to vector<1x32xf32>
    %74 = vector.shape_cast %71 : vector<1x32xf32> to vector<1x1x32xf32>
    tpu.vector_store %arg7[%c0_46, %c3_47, %c0_48], %74 {strides = array<i32>} : memref<1x8x32xf32, #tpu.memory_space<vmem>>, vector<1x1x32xf32>,
    %c3_49 = arith.constant 3 : index
    %c0_50 = arith.constant 0 : index
    %75 = vector.load %arg8[%c3_49, %c0_50] : memref<8x64xf32, #tpu.memory_space<vmem>>, vector<1x64xf32>
    %76 = vector.extract_strided_slice %75 {offsets = [0, 0], sizes = [1, 32], strides = [1, 1]} : vector<1x64xf32> to vector<1x32xf32>
    %77 = vector.extract_strided_slice %75 {offsets = [0, 32], sizes = [1, 32], strides = [1, 1]} : vector<1x64xf32> to vector<1x32xf32>
    %78 = vector.broadcast %76 : vector<1x32xf32> to vector<8x32xf32>
    %79 = arith.mulf %68, %78 : vector<8x32xf32>
    %cst_51 = arith.constant 1.000000e+00 : f32
    %80 = vector.broadcast %cst_51 : f32 to vector<8x32xf32>
    %81 = arith.subf %80, %79 : vector<8x32xf32>
    %82 = arith.mulf %66, %81 : vector<8x32xf32>
    %83 = vector.broadcast %77 : vector<1x32xf32> to vector<8x32xf32>
    %84 = arith.mulf %68, %83 : vector<8x32xf32>
    %85 = arith.addf %82, %84 : vector<8x32xf32>
    %c0_52 = arith.constant 0 : index
    %c4 = arith.constant 4 : index
    %c0_53 = arith.constant 0 : index
    %c0_54 = arith.constant 0 : index
    %86 = vector.load %arg2[%c0_52, %c4, %c0_53, %c0_54] : memref<1x8x8x32xf32, #tpu.memory_space<vmem>>, vector<1x1x8x32xf32>
    %87 = vector.shape_cast %86 : vector<1x1x8x32xf32> to vector<8x32xf32>
    %88 = arith.mulf %87, %85 : vector<8x32xf32>
    %cst_55 = arith.constant dense<0.000000e+00> : vector<32xf32>
    %89 = vector.multi_reduction <add>, %88, %cst_55 [0] : vector<8x32xf32> to vector<32xf32>
    %90 = vector.shape_cast %89 : vector<32xf32> to vector<1x32xf32>
    %c0_56 = arith.constant 0 : index
    %c4_57 = arith.constant 4 : index
    %c0_58 = arith.constant 0 : index
    %91 = vector.load %arg7[%c0_56, %c4_57, %c0_58] : memref<1x8x32xf32, #tpu.memory_space<vmem>>, vector<1x1x32xf32>
    %92 = vector.shape_cast %91 : vector<1x1x32xf32> to vector<1x32xf32>
    %93 = vector.shape_cast %90 : vector<1x32xf32> to vector<1x1x32xf32>
    tpu.vector_store %arg7[%c0_56, %c4_57, %c0_58], %93 {strides = array<i32>} : memref<1x8x32xf32, #tpu.memory_space<vmem>>, vector<1x1x32xf32>,
    %c4_59 = arith.constant 4 : index
    %c0_60 = arith.constant 0 : index
    %94 = vector.load %arg8[%c4_59, %c0_60] : memref<8x64xf32, #tpu.memory_space<vmem>>, vector<1x64xf32>
    %95 = vector.extract_strided_slice %94 {offsets = [0, 0], sizes = [1, 32], strides = [1, 1]} : vector<1x64xf32> to vector<1x32xf32>
    %96 = vector.extract_strided_slice %94 {offsets = [0, 32], sizes = [1, 32], strides = [1, 1]} : vector<1x64xf32> to vector<1x32xf32>
    %97 = vector.broadcast %95 : vector<1x32xf32> to vector<8x32xf32>
    %98 = arith.mulf %87, %97 : vector<8x32xf32>
    %cst_61 = arith.constant 1.000000e+00 : f32
    %99 = vector.broadcast %cst_61 : f32 to vector<8x32xf32>
    %100 = arith.subf %99, %98 : vector<8x32xf32>
    %101 = arith.mulf %85, %100 : vector<8x32xf32>
    %102 = vector.broadcast %96 : vector<1x32xf32> to vector<8x32xf32>
    %103 = arith.mulf %87, %102 : vector<8x32xf32>
    %104 = arith.addf %101, %103 : vector<8x32xf32>
    %c0_62 = arith.constant 0 : index
    %c5 = arith.constant 5 : index
    %c0_63 = arith.constant 0 : index
    %c0_64 = arith.constant 0 : index
    %105 = vector.load %arg2[%c0_62, %c5, %c0_63, %c0_64] : memref<1x8x8x32xf32, #tpu.memory_space<vmem>>, vector<1x1x8x32xf32>
    %106 = vector.shape_cast %105 : vector<1x1x8x32xf32> to vector<8x32xf32>
    %107 = arith.mulf %106, %104 : vector<8x32xf32>
    %cst_65 = arith.constant dense<0.000000e+00> : vector<32xf32>
    %108 = vector.multi_reduction <add>, %107, %cst_65 [0] : vector<8x32xf32> to vector<32xf32>
    %109 = vector.shape_cast %108 : vector<32xf32> to vector<1x32xf32>
    %c0_66 = arith.constant 0 : index
    %c5_67 = arith.constant 5 : index
    %c0_68 = arith.constant 0 : index
    %110 = vector.load %arg7[%c0_66, %c5_67, %c0_68] : memref<1x8x32xf32, #tpu.memory_space<vmem>>, vector<1x1x32xf32>
    %111 = vector.shape_cast %110 : vector<1x1x32xf32> to vector<1x32xf32>
    %112 = vector.shape_cast %109 : vector<1x32xf32> to vector<1x1x32xf32>
    tpu.vector_store %arg7[%c0_66, %c5_67, %c0_68], %112 {strides = array<i32>} : memref<1x8x32xf32, #tpu.memory_space<vmem>>, vector<1x1x32xf32>,
    %c5_69 = arith.constant 5 : index
    %c0_70 = arith.constant 0 : index
    %113 = vector.load %arg8[%c5_69, %c0_70] : memref<8x64xf32, #tpu.memory_space<vmem>>, vector<1x64xf32>
    %114 = vector.extract_strided_slice %113 {offsets = [0, 0], sizes = [1, 32], strides = [1, 1]} : vector<1x64xf32> to vector<1x32xf32>
    %115 = vector.extract_strided_slice %113 {offsets = [0, 32], sizes = [1, 32], strides = [1, 1]} : vector<1x64xf32> to vector<1x32xf32>
    %116 = vector.broadcast %114 : vector<1x32xf32> to vector<8x32xf32>
    %117 = arith.mulf %106, %116 : vector<8x32xf32>
    %cst_71 = arith.constant 1.000000e+00 : f32
    %118 = vector.broadcast %cst_71 : f32 to vector<8x32xf32>
    %119 = arith.subf %118, %117 : vector<8x32xf32>
    %120 = arith.mulf %104, %119 : vector<8x32xf32>
    %121 = vector.broadcast %115 : vector<1x32xf32> to vector<8x32xf32>
    %122 = arith.mulf %106, %121 : vector<8x32xf32>
    %123 = arith.addf %120, %122 : vector<8x32xf32>
    %c0_72 = arith.constant 0 : index
    %c6 = arith.constant 6 : index
    %c0_73 = arith.constant 0 : index
    %c0_74 = arith.constant 0 : index
    %124 = vector.load %arg2[%c0_72, %c6, %c0_73, %c0_74] : memref<1x8x8x32xf32, #tpu.memory_space<vmem>>, vector<1x1x8x32xf32>
    %125 = vector.shape_cast %124 : vector<1x1x8x32xf32> to vector<8x32xf32>
    %126 = arith.mulf %125, %123 : vector<8x32xf32>
    %cst_75 = arith.constant dense<0.000000e+00> : vector<32xf32>
    %127 = vector.multi_reduction <add>, %126, %cst_75 [0] : vector<8x32xf32> to vector<32xf32>
    %128 = vector.shape_cast %127 : vector<32xf32> to vector<1x32xf32>
    %c0_76 = arith.constant 0 : index
    %c6_77 = arith.constant 6 : index
    %c0_78 = arith.constant 0 : index
    %129 = vector.load %arg7[%c0_76, %c6_77, %c0_78] : memref<1x8x32xf32, #tpu.memory_space<vmem>>, vector<1x1x32xf32>
    %130 = vector.shape_cast %129 : vector<1x1x32xf32> to vector<1x32xf32>
    %131 = vector.shape_cast %128 : vector<1x32xf32> to vector<1x1x32xf32>
    tpu.vector_store %arg7[%c0_76, %c6_77, %c0_78], %131 {strides = array<i32>} : memref<1x8x32xf32, #tpu.memory_space<vmem>>, vector<1x1x32xf32>,
    %c6_79 = arith.constant 6 : index
    %c0_80 = arith.constant 0 : index
    %132 = vector.load %arg8[%c6_79, %c0_80] : memref<8x64xf32, #tpu.memory_space<vmem>>, vector<1x64xf32>
    %133 = vector.extract_strided_slice %132 {offsets = [0, 0], sizes = [1, 32], strides = [1, 1]} : vector<1x64xf32> to vector<1x32xf32>
    %134 = vector.extract_strided_slice %132 {offsets = [0, 32], sizes = [1, 32], strides = [1, 1]} : vector<1x64xf32> to vector<1x32xf32>
    %135 = vector.broadcast %133 : vector<1x32xf32> to vector<8x32xf32>
    %136 = arith.mulf %125, %135 : vector<8x32xf32>
    %cst_81 = arith.constant 1.000000e+00 : f32
    %137 = vector.broadcast %cst_81 : f32 to vector<8x32xf32>
    %138 = arith.subf %137, %136 : vector<8x32xf32>
    %139 = arith.mulf %123, %138 : vector<8x32xf32>
    %140 = vector.broadcast %134 : vector<1x32xf32> to vector<8x32xf32>
    %141 = arith.mulf %125, %140 : vector<8x32xf32>
    %142 = arith.addf %139, %141 : vector<8x32xf32>
    %c0_82 = arith.constant 0 : index
    %c7 = arith.constant 7 : index
    %c0_83 = arith.constant 0 : index
    %c0_84 = arith.constant 0 : index
    %143 = vector.load %arg2[%c0_82, %c7, %c0_83, %c0_84] : memref<1x8x8x32xf32, #tpu.memory_space<vmem>>, vector<1x1x8x32xf32>
    %144 = vector.shape_cast %143 : vector<1x1x8x32xf32> to vector<8x32xf32>
    %145 = arith.mulf %144, %142 : vector<8x32xf32>
    %cst_85 = arith.constant dense<0.000000e+00> : vector<32xf32>
    %146 = vector.multi_reduction <add>, %145, %cst_85 [0] : vector<8x32xf32> to vector<32xf32>
    %147 = vector.shape_cast %146 : vector<32xf32> to vector<1x32xf32>
    %c0_86 = arith.constant 0 : index
    %c7_87 = arith.constant 7 : index
    %c0_88 = arith.constant 0 : index
    %148 = vector.load %arg7[%c0_86, %c7_87, %c0_88] : memref<1x8x32xf32, #tpu.memory_space<vmem>>, vector<1x1x32xf32>
    %149 = vector.shape_cast %148 : vector<1x1x32xf32> to vector<1x32xf32>
    %150 = vector.shape_cast %147 : vector<1x32xf32> to vector<1x1x32xf32>
    tpu.vector_store %arg7[%c0_86, %c7_87, %c0_88], %150 {strides = array<i32>} : memref<1x8x32xf32, #tpu.memory_space<vmem>>, vector<1x1x32xf32>,
    %c7_89 = arith.constant 7 : index
    %c0_90 = arith.constant 0 : index
    %151 = vector.load %arg8[%c7_89, %c0_90] : memref<8x64xf32, #tpu.memory_space<vmem>>, vector<1x64xf32>
    %152 = vector.extract_strided_slice %151 {offsets = [0, 0], sizes = [1, 32], strides = [1, 1]} : vector<1x64xf32> to vector<1x32xf32>
    %153 = vector.extract_strided_slice %151 {offsets = [0, 32], sizes = [1, 32], strides = [1, 1]} : vector<1x64xf32> to vector<1x32xf32>
    %154 = vector.broadcast %152 : vector<1x32xf32> to vector<8x32xf32>
    %155 = arith.mulf %144, %154 : vector<8x32xf32>
    %cst_91 = arith.constant 1.000000e+00 : f32
    %156 = vector.broadcast %cst_91 : f32 to vector<8x32xf32>
    %157 = arith.subf %156, %155 : vector<8x32xf32>
    %158 = arith.mulf %142, %157 : vector<8x32xf32>
    %159 = vector.broadcast %153 : vector<1x32xf32> to vector<8x32xf32>
    %160 = arith.mulf %144, %159 : vector<8x32xf32>
    %161 = arith.addf %158, %160 : vector<8x32xf32>
    %c0_92 = arith.constant 0 : index
    %c0_93 = arith.constant 0 : index
    %c0_94 = arith.constant 0 : index
    %162 = vector.load %arg6[%c0_92, %c0_93, %c0_94] : memref<1x8x32xf32, #tpu.memory_space<vmem>>, vector<1x8x32xf32>
    %163 = vector.shape_cast %162 : vector<1x8x32xf32> to vector<8x32xf32>
    %164 = vector.shape_cast %161 : vector<8x32xf32> to vector<1x8x32xf32>
    tpu.vector_store %arg6[%c0_92, %c0_93, %c0_94], %164 {strides = array<i32>} : memref<1x8x32xf32, #tpu.memory_space<vmem>>, vector<1x8x32xf32>,
    return
  }
  func.func @transform_0(%arg0: i32) -> (i32, i32, i32) {
    %c0_i32 = arith.constant 0 : i32
    %c0_i32_0 = arith.constant 0 : i32
    %c0_i32_1 = arith.constant 0 : i32
    return %arg0, %c0_i32, %c0_i32_0 : i32, i32, i32
  }
  func.func @transform_1(%arg0: i32) -> (i32, i32, i32, i32) {
    %c0_i32 = arith.constant 0 : i32
    %c0_i32_0 = arith.constant 0 : i32
    %c0_i32_1 = arith.constant 0 : i32
    %c0_i32_2 = arith.constant 0 : i32
    return %arg0, %c0_i32, %c0_i32_0, %c0_i32_1 : i32, i32, i32, i32
  }
  func.func @transform_2(%arg0: i32) -> (i32, i32, i32) {
    %c0_i32 = arith.constant 0 : i32
    %c0_i32_0 = arith.constant 0 : i32
    %c0_i32_1 = arith.constant 0 : i32
    return %arg0, %c0_i32, %c0_i32_0 : i32, i32, i32
  }
  func.func @transform_3(%arg0: i32) -> (i32, i32) {
    %c0_i32 = arith.constant 0 : i32
    %c0_i32_0 = arith.constant 0 : i32
    %c0_i32_1 = arith.constant 0 : i32
    return %c0_i32, %c0_i32_0 : i32, i32
  }
  func.func @transform_4(%arg0: i32) -> (i32, i32) {
    %c0_i32 = arith.constant 0 : i32
    %c0_i32_0 = arith.constant 0 : i32
    %c0_i32_1 = arith.constant 0 : i32
    return %c0_i32, %c0_i32_0 : i32, i32
  }
  func.func @transform_5(%arg0: i32) -> (i32, i32, i32) {
    %c0_i32 = arith.constant 0 : i32
    %c0_i32_0 = arith.constant 0 : i32
    %c0_i32_1 = arith.constant 0 : i32
    return %arg0, %c0_i32, %c0_i32_0 : i32, i32, i32
  }
  func.func @transform_6(%arg0: i32) -> (i32, i32, i32) {
    %c0_i32 = arith.constant 0 : i32
    %c0_i32_0 = arith.constant 0 : i32
    %c0_i32_1 = arith.constant 0 : i32
    return %arg0, %c0_i32, %c0_i32_0 : i32, i32, i32
  }
}

</mosaic_0001>

<llo_original>
// kernel: step.1
$region0: #{step.1}
  #allocation0 [shape = 'u32[]', space=smem, size = 0x4, offset = 0x4, fixed_abs, tag = 'smem constant byte address 0x4 - core index']
  #allocation1 [shape = 'u32[144,128]{1,0:T(1,128)}', space=vmem, size = 0x12000, scoped, tag = 'internal scratch']
  #allocation2 [shape = 'f32[8,64]{1,0:T(8,128)}', space=vmem, size = 0x1000, scoped, tag = 'scratch operand']
  %s0 = inlined_call_operand.vmem [shape: f32[4,8,32], index: 0, kind: input, shape index: {}]
  %s1 = inlined_call_operand.vmem [shape: f32[4,8,8,32], index: 1, kind: input, shape index: {}]
  %s2 = inlined_call_operand.vmem [shape: f32[4,8,32], index: 2, kind: input, shape index: {}]
  %s3 = inlined_call_operand.vmem [shape: f32[32,64], index: 3, kind: input, shape index: {}]
  %s4 = inlined_call_operand.vmem [shape: f32[1,64], index: 4, kind: input, shape index: {}]
  %s5 = inlined_call_operand.hbm [shape: f32[4,8,32], index: 5, kind: output, shape index: {0}]
  %s6 = inlined_call_operand.hbm [shape: f32[4,8,32], index: 6, kind: output, shape index: {1}]
  %7 = xla_tuple %s5, %s6
  %s8 = sld [smem:[#allocation0]]
  $region61: #{step.1} parent=0
    _
  %s10 = ssub.s32 1, %s8
  %s11 = scalar_select 0, %s10, %s8
  $region1: #{step.1} parent=0
    #allocation3 [shape = 'u8[8192]{0}', space=vmem, size = 0x2000, scoped, tag = 'output window, operand 0']
    #allocation4 [shape = 's32[2]{0}', space=sflag, size = 0x8, scoped, tag = 'scoped memory for step.1']
    #allocation5 [shape = 'u8[8192]{0}', space=vmem, size = 0x2000, scoped, tag = 'output window, operand 1']
    #allocation6 [shape = 's32[2]{0}', space=sflag, size = 0x8, scoped, tag = 'scoped memory for step.1']
    %12 = vsyncpa [#allocation4], 0
    %s13 = scalar_lea.sflag [#allocation4], 1
    %14 = vsyncpa %s13, 0
    %15 = vsyncpa [#allocation6], 0
    %s16 = scalar_lea.sflag [#allocation6], 1
    %17 = vsyncpa %s16, 0
    loop: start=0, step=1, limit=6
    $region2: #{step.1} parent=1 // loop_pre_header
      _
    $region3: #{step.1} parent=1 // loop_header
      %s19 = sphi 0, %s23
      %p20 = scmp.ge.s32.totalorder %s19, 6
      %s29 = sphi 0, %s31
      %s32 = sphi 0, %s29
      %s33 = sphi 0, %s32
      %s49 = sphi 0, %s33
      %s55 = sphi 0, %s57
      %s58 = sphi 0, %s55
      %s59 = sphi 0, %s58
      %s75 = sphi 0, %s59
      %s81 = sphi 0, %s83
      %s84 = sphi 0, %s81
      %s85 = sphi 0, %s84
      %s101 = sphi 0, %s85
      %s105 = sphi 0, %s105
      %s107 = sphi 0, %s105
      %s108 = sphi 0, %s107
      %s122 = sphi 0, %s108
      %s126 = sphi 0, %s126
      %s128 = sphi 0, %s126
      %s129 = sphi 0, %s128
      %s143 = sphi 0, %s129
      %s149 = sphi 0, %s151
      %s152 = sphi 0, %s149
      %s153 = sphi 0, %s152
      %s169 = sphi 0, %s153
      %s175 = sphi 0, %s177
      %s178 = sphi 0, %s175
      %s179 = sphi 0, %s178
      %s195 = sphi 0, %s179
    $region4: #{step.1} parent=1 // loop_header_branch
      %22 = sbr.rel (%p20) target = $region8
    $region5: #{step.1} parent=1 // loop_body
      %s24 = ssub.s32 %s19, 1
      %s25 = ssub.s32 %s19, 2
      %s26 = sadd.s32 %s19, 1
      %s27 = ssub.s32 %s19, %s26
      %p28 = scmp.eq.s32.totalorder %s27, 0
      %s30 = sadd.s32 %s29, 1
      %s31 = scalar_select %p28, %s29, %s30
      %p34 = pneg %p28
      %p35 = scmp.eq.s32.totalorder %s19, 3
      %p36 = por %p34, %p35
      %p37 = scmp.ne.s32.totalorder %s29, %s32
      %p38 = scmp.eq.s32.totalorder %s19, 0
      %p39 = por %p37, %p38
      %p40 = scmp.ne.s32.totalorder %s29, %s32
      %p41 = scmp.eq.s32.totalorder %s24, 3
      %p42 = por %p40, %p41
      %p43 = scmp.ne.s32.totalorder %s32, %s33
      %p44 = scmp.eq.s32.totalorder %s24, 0
      %p45 = por %p43, %p44
      %p46 = scmp.ne.s32.totalorder %s32, %s33
      %p47 = scmp.eq.s32.totalorder %s25, 3
      %p48 = por %p46, %p47
      %p50 = scmp.ne.s32.totalorder %s33, %s49
      %p51 = scmp.eq.s32.totalorder %s25, 0
      %p52 = por %p50, %p51
      %s53 = ssub.s32 %s19, %s26
      %p54 = scmp.eq.s32.totalorder %s53, 0
      %s56 = sadd.s32 %s55, 1
      %s57 = scalar_select %p54, %s55, %s56
      %p60 = pneg %p54
      %p61 = scmp.eq.s32.totalorder %s19, 3
      %p62 = por %p60, %p61
      %p63 = scmp.ne.s32.totalorder %s55, %s58
      %p64 = scmp.eq.s32.totalorder %s19, 0
      %p65 = por %p63, %p64
      %p66 = scmp.ne.s32.totalorder %s55, %s58
      %p67 = scmp.eq.s32.totalorder %s24, 3
      %p68 = por %p66, %p67
      %p69 = scmp.ne.s32.totalorder %s58, %s59
      %p70 = scmp.eq.s32.totalorder %s24, 0
      %p71 = por %p69, %p70
      %p72 = scmp.ne.s32.totalorder %s58, %s59
      %p73 = scmp.eq.s32.totalorder %s25, 3
      %p74 = por %p72, %p73
      %p76 = scmp.ne.s32.totalorder %s59, %s75
      %p77 = scmp.eq.s32.totalorder %s25, 0
      %p78 = por %p76, %p77
      %s79 = ssub.s32 %s19, %s26
      %p80 = scmp.eq.s32.totalorder %s79, 0
      %s82 = sadd.s32 %s81, 1
      %s83 = scalar_select %p80, %s81, %s82
      %p86 = pneg %p80
      %p87 = scmp.eq.s32.totalorder %s19, 3
      %p88 = por %p86, %p87
      %p89 = scmp.ne.s32.totalorder %s81, %s84
      %p90 = scmp.eq.s32.totalorder %s19, 0
      %p91 = por %p89, %p90
      %p92 = scmp.ne.s32.totalorder %s81, %s84
      %p93 = scmp.eq.s32.totalorder %s24, 3
      %p94 = por %p92, %p93
      %p95 = scmp.ne.s32.totalorder %s84, %s85
      %p96 = scmp.eq.s32.totalorder %s24, 0
      %p97 = por %p95, %p96
      %p98 = scmp.ne.s32.totalorder %s84, %s85
      %p99 = scmp.eq.s32.totalorder %s25, 3
      %p100 = por %p98, %p99
      %p102 = scmp.ne.s32.totalorder %s85, %s101
      %p103 = scmp.eq.s32.totalorder %s25, 0
      %p104 = por %p102, %p103
      %s106 = sadd.s32 %s105, 1
      %p109 = scmp.eq.s32.totalorder %s19, 3
      %p110 = scmp.ne.s32.totalorder %s105, %s107
      %p111 = scmp.eq.s32.totalorder %s19, 0
      %p112 = por %p110, %p111
      %p113 = scmp.ne.s32.totalorder %s105, %s107
      %p114 = scmp.eq.s32.totalorder %s24, 3
      %p115 = por %p113, %p114
      %p116 = scmp.ne.s32.totalorder %s107, %s108
      %p117 = scmp.eq.s32.totalorder %s24, 0
      %p118 = por %p116, %p117
      %p119 = scmp.ne.s32.totalorder %s107, %s108
      %p120 = scmp.eq.s32.totalorder %s25, 3
      %p121 = por %p119, %p120
      %p123 = scmp.ne.s32.totalorder %s108, %s122
      %p124 = scmp.eq.s32.totalorder %s25, 0
      %p125 = por %p123, %p124
      %s127 = sadd.s32 %s126, 1
      %p130 = scmp.eq.s32.totalorder %s19, 3
      %p131 = scmp.ne.s32.totalorder %s126, %s128
      %p132 = scmp.eq.s32.totalorder %s19, 0
      %p133 = por %p131, %p132
      %p134 = scmp.ne.s32.totalorder %s126, %s128
      %p135 = scmp.eq.s32.totalorder %s24, 3
      %p136 = por %p134, %p135
      %p137 = scmp.ne.s32.totalorder %s128, %s129
      %p138 = scmp.eq.s32.totalorder %s24, 0
      %p139 = por %p137, %p138
      %p140 = scmp.ne.s32.totalorder %s128, %s129
      %p141 = scmp.eq.s32.totalorder %s25, 3
      %p142 = por %p140, %p141
      %p144 = scmp.ne.s32.totalorder %s129, %s143
      %p145 = scmp.eq.s32.totalorder %s25, 0
      %p146 = por %p144, %p145
      %s147 = ssub.s32 %s19, %s26
      %p148 = scmp.eq.s32.totalorder %s147, 0
      %s150 = sadd.s32 %s149, 1
      %s151 = scalar_select %p148, %s149, %s150
      %p154 = pneg %p148
      %p155 = scmp.eq.s32.totalorder %s19, 3
      %p156 = por %p154, %p155
      %p157 = scmp.ne.s32.totalorder %s149, %s152
      %p158 = scmp.eq.s32.totalorder %s19, 0
      %p159 = por %p157, %p158
      %p160 = scmp.ne.s32.totalorder %s149, %s152
      %p161 = scmp.eq.s32.totalorder %s24, 3
      %p162 = por %p160, %p161
      %p163 = scmp.ne.s32.totalorder %s152, %s153
      %p164 = scmp.eq.s32.totalorder %s24, 0
      %p165 = por %p163, %p164
      %p166 = scmp.ne.s32.totalorder %s152, %s153
      %p167 = scmp.eq.s32.totalorder %s25, 3
      %p168 = por %p166, %p167
      %p170 = scmp.ne.s32.totalorder %s153, %s169
      %p171 = scmp.eq.s32.totalorder %s25, 0
      %p172 = por %p170, %p171
      %s173 = ssub.s32 %s19, %s26
      %p174 = scmp.eq.s32.totalorder %s173, 0
      %s176 = sadd.s32 %s175, 1
      %s177 = scalar_select %p174, %s175, %s176
      %p180 = pneg %p174
      %p181 = scmp.eq.s32.totalorder %s19, 3
      %p182 = por %p180, %p181
      %p183 = scmp.ne.s32.totalorder %s175, %s178
      %p184 = scmp.eq.s32.totalorder %s19, 0
      %p185 = por %p183, %p184
      %p186 = scmp.ne.s32.totalorder %s175, %s178
      %p187 = scmp.eq.s32.totalorder %s24, 3
      %p188 = por %p186, %p187
      %p189 = scmp.ne.s32.totalorder %s178, %s179
      %p190 = scmp.eq.s32.totalorder %s24, 0
      %p191 = por %p189, %p190
      %p192 = scmp.ne.s32.totalorder %s178, %s179
      %p193 = scmp.eq.s32.totalorder %s25, 3
      %p194 = por %p192, %p193
      %p196 = scmp.ne.s32.totalorder %s179, %s195
      %p197 = scmp.eq.s32.totalorder %s25, 0
      %p198 = por %p196, %p197
      %p199 = scmp.le.s32.totalorder 1, %s19
      %p200 = scmp.lt.s32.totalorder %s19, 5
      %p201 = pnand %p199, %p200
      %p202 = pneg %p201
      // Predicated region
      $region9: #{step.1} parent=5 // pred_check
        _
      $region10: #{step.1} parent=5 // pred_check_branch
        %204 = sbr.rel (%p201) target = $region12
      $region11: #{step.1} parent=5 // pred_region
        %s205 = ssub.s32 %s19, 1
        // Predicated region
        $region13: #{step.1} parent=11 // pred_check
          %p206 = pneg %p118
        $region14: #{step.1} parent=11 // pred_check_branch
          %208 = sbr.rel (%p206) target = $region16
        $region15: #{step.1} parent=11 // pred_region
          _
        $region16: #{step.1} parent=11 // pred_fallthru
          _
        // Predicated region
        $region17: #{step.1} parent=11 // pred_check
          %p209 = pneg %p139
        $region18: #{step.1} parent=11 // pred_check_branch
          %211 = sbr.rel (%p209) target = $region20
        $region19: #{step.1} parent=11 // pred_region
          _
        $region20: #{step.1} parent=11 // pred_fallthru
          _
      $region12: #{step.1} parent=5 // pred_fallthru
        _
      %p212 = scmp.lt.s32.totalorder %s19, 4
      // Predicated region
      $region21: #{step.1} parent=5 // pred_check
        %p213 = pneg %p212
      $region22: #{step.1} parent=5 // pred_check_branch
        %215 = sbr.rel (%p213) target = $region24
      $region23: #{step.1} parent=5 // pred_region
        // Predicated region
        $region25: #{step.1} parent=23 // pred_check
          %p216 = pneg %p39
        $region26: #{step.1} parent=23 // pred_check_branch
          %218 = sbr.rel (%p216) target = $region28
        $region27: #{step.1} parent=23 // pred_region
          %p219 = scmp.lt.s32.totalorder %s19, 3
          %s220 = scalar_select %p219, %s19, 3
          %s221 = smul.addr %s220, 8
          %s222 = scalar_lea.vmem %s0, %s221
        $region28: #{step.1} parent=23 // pred_fallthru
          _
        // Predicated region
        $region29: #{step.1} parent=23 // pred_check
          %p223 = pneg %p65
        $region30: #{step.1} parent=23 // pred_check_branch
          %225 = sbr.rel (%p223) target = $region32
        $region31: #{step.1} parent=23 // pred_region
          %p226 = scmp.lt.s32.totalorder %s19, 3
          %s227 = scalar_select %p226, %s19, 3
          %s228 = smul.addr %s227, 8
          %s229 = smul.addr %s228, 8
          %s230 = scalar_lea.vmem %s1, %s229
        $region32: #{step.1} parent=23 // pred_fallthru
          _
        // Predicated region
        $region33: #{step.1} parent=23 // pred_check
          %p231 = pneg %p91
        $region34: #{step.1} parent=23 // pred_check_branch
          %233 = sbr.rel (%p231) target = $region36
        $region35: #{step.1} parent=23 // pred_region
          %p234 = scmp.lt.s32.totalorder %s19, 3
          %s235 = scalar_select %p234, %s19, 3
          %s236 = smul.addr %s235, 8
          %s237 = scalar_lea.vmem %s2, %s236
        $region36: #{step.1} parent=23 // pred_fallthru
          _
      $region24: #{step.1} parent=5 // pred_fallthru
        _
      %p238 = scmp.le.s32.totalorder 1, %s19
      %p239 = scmp.lt.s32.totalorder %s19, 5
      %p240 = pnand %p238, %p239
      %p241 = pneg %p240
      // Predicated region
      $region37: #{step.1} parent=5 // pred_check
        _
      $region38: #{step.1} parent=5 // pred_check_branch
        %243 = sbr.rel (%p240) target = $region40
      $region39: #{step.1} parent=5 // pred_region
        %s244 = ssub.s32 %s19, 1
        %p245 = scmp.lt.s32.totalorder %s24, 3
        %s246 = scalar_select %p245, %s24, 3
        %s247 = smul.addr %s246, 8
        %s248 = scalar_lea.vmem %s0, %s247
        %p249 = pneg %p45
        %p250 = pneg %p42
        %p251 = scmp.lt.s32.totalorder %s24, 3
        %s252 = scalar_select %p251, %s24, 3
        %s253 = smul.addr %s252, 8
        %s254 = smul.addr %s253, 8
        %s255 = scalar_lea.vmem %s1, %s254
        %p256 = pneg %p71
        %p257 = pneg %p68
        %p258 = scmp.lt.s32.totalorder %s24, 3
        %s259 = scalar_select %p258, %s24, 3
        %s260 = smul.addr %s259, 8
        %s261 = scalar_lea.vmem %s2, %s260
        %p262 = pneg %p97
        %p263 = pneg %p94
        %p264 = pneg %p118
        %p265 = pneg %p115
        %p266 = pneg %p139
        %p267 = pneg %p136
        %p268 = pneg %p165
        %p269 = pneg %p162
        %s270 = sand.u32 %s152, 1
        %s271 = scalar_lea.sflag [#allocation4], %s270
        %s272 = sand.u32 %s152, 1
        %s273 = smul.addr %s272, 8
        %s274 = scalar_lea.vmem [#allocation3], %s273
        %p275 = pneg %p191
        %p276 = pneg %p188
        %s277 = sand.u32 %s178, 1
        %s278 = scalar_lea.sflag [#allocation6], %s277
        %s279 = sand.u32 %s178, 1
        %s280 = smul.addr %s279, 8
        %s281 = scalar_lea.vmem [#allocation5], %s280
        %p282 = scmp.lt.s32.totalorder %s24, 3
        %s283 = scalar_select %p282, %s24, 3
        %s284 = smul.addr %s283, 8
        %s285 = scalar_lea.vmem %s0, %s284
        %p286 = scmp.lt.s32.totalorder %s24, 3
        %s287 = scalar_select %p286, %s24, 3
        %s288 = smul.addr %s287, 8
        %s289 = smul.addr %s288, 8
        %s290 = scalar_lea.vmem %s1, %s289
        %p291 = scmp.lt.s32.totalorder %s24, 3
        %s292 = scalar_select %p291, %s24, 3
        %s293 = smul.addr %s292, 8
        %s294 = scalar_lea.vmem %s2, %s293
        %v295 = vld [vmem:[%s294] sm:$0xff]
        %v296 = vld [vmem:[%s3] sm:$0xff]
        %v297 = vld [vmem:[%s3 + $0x8] sm:$0xff]
        %v298 = vld [vmem:[%s3 + $0x10] sm:$0xff]
        %v299 = vld [vmem:[%s3 + $0x18] sm:$0xff]
        %v300 = vld [vmem:[%s4] sm:$0x1]
        %v302 = vlaneseq
        %v303 = vshrl.u32 %v302, 7
        %v304 = vsub.s32 0, %v303
        %v305 = vrot.slane %v300, %v304
        %vm307 = vcmask 261120
        %v309 = vsel %vm307, %v295, 0
        %311 = vmatprep.subr.mxu0 0.0
        %312 = vmatpush1.msra.mxu0 0.0
        %313 = vmatprep.subr.mxu0 0.0
        %314 = vmatpush1.msra.mxu0 0.0
        %315 = vmatprep.subr.mxu0 0.0
        %316 = vmatpush1.msra.mxu0 0.0
        %317 = vmatprep.subr.mxu0 0.0
        %318 = vmatpush1.msra.mxu0 0.0
        %319 = vmatprep.subr.mxu0 0.0
        %320 = vmatpush1.msra.mxu0 0.0
        %321 = vmatprep.subr.mxu0 0.0
        %322 = vmatpush1.msra.mxu0 0.0
        %323 = vmatprep.subr.mxu0 0.0
        %324 = vmatpush1.msra.mxu0 0.0
        %325 = vmatprep.subr.mxu0 0.0
        %326 = vmatpush1.msra.mxu0 0.0
        %327 = vmatprep.subr.mxu0 0.0
        %328 = vmatpush1.msra.mxu0 0.0
        %329 = vmatprep.subr.mxu0 0.0
        %330 = vmatpush1.msra.mxu0 0.0
        %331 = vmatprep.subr.mxu0 0.0
        %332 = vmatpush1.msra.mxu0 0.0
        %333 = vmatprep.subr.mxu0 0.0
        %334 = vmatpush1.msra.mxu0 0.0
        %335 = vmatprep.subr.mxu0 0.0
        %336 = vmatpush1.msra.mxu0 %v299
        %337 = vmatprep.subr.mxu0 0.0
        %338 = vmatpush1.msra.mxu0 %v298
        %339 = vmatprep.subr.mxu0 0.0
        %340 = vmatpush1.msra.mxu0 %v297
        %341 = vmatprep.subr.mxu0 0.0
        %342 = vmatpush1.msra.mxu0 %v296
        %343 = vmatprep.subr.mxu0 0.0
        %344 = vmatpush2.msra.mxu0 0.0
        %345 = vmatprep.subr.mxu0 0.0
        %346 = vmatpush2.msra.mxu0 0.0
        %347 = vmatprep.subr.mxu0 0.0
        %348 = vmatpush2.msra.mxu0 0.0
        %349 = vmatprep.subr.mxu0 0.0
        %350 = vmatpush2.msra.mxu0 0.0
        %351 = vmatprep.subr.mxu0 0.0
        %352 = vmatpush2.msra.mxu0 0.0
        %353 = vmatprep.subr.mxu0 0.0
        %354 = vmatpush2.msra.mxu0 0.0
        %355 = vmatprep.subr.mxu0 0.0
        %356 = vmatpush2.msra.mxu0 0.0
        %357 = vmatprep.subr.mxu0 0.0
        %358 = vmatpush2.msra.mxu0 0.0
        %359 = vmatprep.subr.mxu0 0.0
        %360 = vmatpush2.msra.mxu0 0.0
        %361 = vmatprep.subr.mxu0 0.0
        %362 = vmatpush2.msra.mxu0 0.0
        %363 = vmatprep.subr.mxu0 0.0
        %364 = vmatpush2.msra.mxu0 0.0
        %365 = vmatprep.subr.mxu0 0.0
        %366 = vmatpush2.msra.mxu0 0.0
        %367 = vmatprep.subr.mxu0 0.0
        %368 = vmatpush2.msra.mxu0 0.0
        %369 = vmatprep.subr.mxu0 0.0
        %370 = vmatpush2.msra.mxu0 0.0
        %371 = vmatprep.subr.mxu0 0.0
        %372 = vmatpush2.msra.mxu0 0.0
        %373 = vmatprep.subr.mxu0 0.0
        %374 = vmatpush2.msra.mxu0 0.0
        %375 = vmatprep.mubr.f32.mxu0 0.0
        %376 = vmatmul.mubr.f32.gmra.mxu0 %v309
        %v377 = vpop.f32.mrf.mxu0
        %v378 = vadd.f32 %v305, %v377
        %v379 = vpop.f32.mrf.mxu0
        %380 = vdwg.mxu0
        %vm381 = vcmask 523264
        %382 = vst.msk [vmem:[#allocation2] sm:$0xff] %vm381, %v378
        %v383 = vld [vmem:[%s285] sm:$0xff]
        %v384 = vld [vmem:[%s290] sm:$0xff]
        %v385 = vmul.f32 %v384, %v383
        %v386 = vsel %vm307, %v385, 0.0
        %v387 = vrot.slane %v386, 4
        %v388 = vadd.f32 %v386, %v387
        %v389 = vrot.slane %v388, 2
        %v390 = vadd.f32 %v388, %v389
        %v391 = vrot.slane %v390, 1
        %v392 = vadd.f32 %v390, %v391
        %vm393 = vcmask 253952
        %394 = vst.msk [vmem:[%s281] sm:$0x1] %vm393, %v392
        %v395 = vld [vmem:[#allocation2] sm:$0x1]
        %v396 = vlaneseq
        %v397 = vshrl.u32 %v396, 7
        %v398 = vsub.s32 0, %v397
        %v399 = vrot.slane %v395, %v398
        %v400 = vmul.f32 %v384, %v399
        %v401 = vsub.f32 1.0, %v400
        %v402 = vmul.f32 %v383, %v401
        %404 = vrot.lane.b32.xlu0 %v399, 96
        %v405 = vpop.permute.xlu0 %404
        %v407 = vmul.f32 %v384, %v405
        %v408 = vadd.f32 %v402, %v407
        %s409 = scalar_lea.vmem %s290, 8
        %v410 = vld [vmem:[%s409] sm:$0xff]
        %v411 = vmul.f32 %v410, %v408
        %v412 = vsel %vm307, %v411, 0.0
        %v413 = vrot.slane %v412, 4
        %v414 = vadd.f32 %v412, %v413
        %v415 = vrot.slane %v414, 2
        %v416 = vadd.f32 %v414, %v415
        %v417 = vrot.slane %v416, 1
        %v418 = vadd.f32 %v416, %v417
        %419 = vst.msk [vmem:[%s281 + $0x1] sm:$0x1] %vm393, %v418
        %v420 = vld [vmem:[#allocation2 + $0x1] sm:$0x1]
        %v421 = vlaneseq
        %v422 = vshrl.u32 %v421, 7
        %v423 = vsub.s32 0, %v422
        %v424 = vrot.slane %v420, %v423
        %v425 = vmul.f32 %v410, %v424
        %v426 = vsub.f32 1.0, %v425
        %v427 = vmul.f32 %v408, %v426
        %429 = vrot.lane.b32.xlu0 %v424, 96
        %v430 = vpop.permute.xlu0 %429
        %v432 = vmul.f32 %v410, %v430
        %v433 = vadd.f32 %v427, %v432
        %s434 = scalar_lea.vmem %s290, 16
        %v435 = vld [vmem:[%s434] sm:$0xff]
        %v436 = vmul.f32 %v435, %v433
        %v437 = vsel %vm307, %v436, 0.0
        %v438 = vrot.slane %v437, 4
        %v439 = vadd.f32 %v437, %v438
        %v440 = vrot.slane %v439, 2
        %v441 = vadd.f32 %v439, %v440
        %v442 = vrot.slane %v441, 1
        %v443 = vadd.f32 %v441, %v442
        %444 = vst.msk [vmem:[%s281 + $0x2] sm:$0x1] %vm393, %v443
        %v445 = vld [vmem:[#allocation2 + $0x2] sm:$0x1]
        %v446 = vlaneseq
        %v447 = vshrl.u32 %v446, 7
        %v448 = vsub.s32 0, %v447
        %v449 = vrot.slane %v445, %v448
        %v450 = vmul.f32 %v435, %v449
        %v451 = vsub.f32 1.0, %v450
        %v452 = vmul.f32 %v433, %v451
        %454 = vrot.lane.b32.xlu0 %v449, 96
        %v455 = vpop.permute.xlu0 %454
        %v457 = vmul.f32 %v435, %v455
        %v458 = vadd.f32 %v452, %v457
        %s459 = scalar_lea.vmem %s290, 24
        %v460 = vld [vmem:[%s459] sm:$0xff]
        %v461 = vmul.f32 %v460, %v458
        %v462 = vsel %vm307, %v461, 0.0
        %v463 = vrot.slane %v462, 4
        %v464 = vadd.f32 %v462, %v463
        %v465 = vrot.slane %v464, 2
        %v466 = vadd.f32 %v464, %v465
        %v467 = vrot.slane %v466, 1
        %v468 = vadd.f32 %v466, %v467
        %469 = vst.msk [vmem:[%s281 + $0x3] sm:$0x1] %vm393, %v468
        %v470 = vld [vmem:[#allocation2 + $0x3] sm:$0x1]
        %v471 = vlaneseq
        %v472 = vshrl.u32 %v471, 7
        %v473 = vsub.s32 0, %v472
        %v474 = vrot.slane %v470, %v473
        %v475 = vmul.f32 %v460, %v474
        %v476 = vsub.f32 1.0, %v475
        %v477 = vmul.f32 %v458, %v476
        %479 = vrot.lane.b32.xlu0 %v474, 96
        %v480 = vpop.permute.xlu0 %479
        %v482 = vmul.f32 %v460, %v480
        %v483 = vadd.f32 %v477, %v482
        %s484 = scalar_lea.vmem %s290, 32
        %v485 = vld [vmem:[%s484] sm:$0xff]
        %v486 = vmul.f32 %v485, %v483
        %v487 = vsel %vm307, %v486, 0.0
        %v488 = vrot.slane %v487, 4
        %v489 = vadd.f32 %v487, %v488
        %v490 = vrot.slane %v489, 2
        %v491 = vadd.f32 %v489, %v490
        %v492 = vrot.slane %v491, 1
        %v493 = vadd.f32 %v491, %v492
        %494 = vst.msk [vmem:[%s281 + $0x4] sm:$0x1] %vm393, %v493
        %v495 = vld [vmem:[#allocation2 + $0x4] sm:$0x1]
        %v496 = vlaneseq
        %v497 = vshrl.u32 %v496, 7
        %v498 = vsub.s32 0, %v497
        %v499 = vrot.slane %v495, %v498
        %v500 = vmul.f32 %v485, %v499
        %v501 = vsub.f32 1.0, %v500
        %v502 = vmul.f32 %v483, %v501
        %504 = vrot.lane.b32.xlu0 %v499, 96
        %v505 = vpop.permute.xlu0 %504
        %v507 = vmul.f32 %v485, %v505
        %v508 = vadd.f32 %v502, %v507
        %s509 = scalar_lea.vmem %s290, 40
        %v510 = vld [vmem:[%s509] sm:$0xff]
        %v511 = vmul.f32 %v510, %v508
        %v512 = vsel %vm307, %v511, 0.0
        %v513 = vrot.slane %v512, 4
        %v514 = vadd.f32 %v512, %v513
        %v515 = vrot.slane %v514, 2
        %v516 = vadd.f32 %v514, %v515
        %v517 = vrot.slane %v516, 1
        %v518 = vadd.f32 %v516, %v517
        %519 = vst.msk [vmem:[%s281 + $0x5] sm:$0x1] %vm393, %v518
        %v520 = vld [vmem:[#allocation2 + $0x5] sm:$0x1]
        %v521 = vlaneseq
        %v522 = vshrl.u32 %v521, 7
        %v523 = vsub.s32 0, %v522
        %v524 = vrot.slane %v520, %v523
        %v525 = vmul.f32 %v510, %v524
        %v526 = vsub.f32 1.0, %v525
        %v527 = vmul.f32 %v508, %v526
        %529 = vrot.lane.b32.xlu0 %v524, 96
        %v530 = vpop.permute.xlu0 %529
        %v532 = vmul.f32 %v510, %v530
        %v533 = vadd.f32 %v527, %v532
        %s534 = scalar_lea.vmem %s290, 48
        %v535 = vld [vmem:[%s534] sm:$0xff]
        %v536 = vmul.f32 %v535, %v533
        %v537 = vsel %vm307, %v536, 0.0
        %v538 = vrot.slane %v537, 4
        %v539 = vadd.f32 %v537, %v538
        %v540 = vrot.slane %v539, 2
        %v541 = vadd.f32 %v539, %v540
        %v542 = vrot.slane %v541, 1
        %v543 = vadd.f32 %v541, %v542
        %544 = vst.msk [vmem:[%s281 + $0x6] sm:$0x1] %vm393, %v543
        %v545 = vld [vmem:[#allocation2 + $0x6] sm:$0x1]
        %v546 = vlaneseq
        %v547 = vshrl.u32 %v546, 7
        %v548 = vsub.s32 0, %v547
        %v549 = vrot.slane %v545, %v548
        %v550 = vmul.f32 %v535, %v549
        %v551 = vsub.f32 1.0, %v550
        %v552 = vmul.f32 %v533, %v551
        %554 = vrot.lane.b32.xlu0 %v549, 96
        %v555 = vpop.permute.xlu0 %554
        %v557 = vmul.f32 %v535, %v555
        %v558 = vadd.f32 %v552, %v557
        %s559 = scalar_lea.vmem %s290, 56
        %v560 = vld [vmem:[%s559] sm:$0xff]
        %v561 = vmul.f32 %v560, %v558
        %v562 = vsel %vm307, %v561, 0.0
        %v563 = vrot.slane %v562, 4
        %v564 = vadd.f32 %v562, %v563
        %v565 = vrot.slane %v564, 2
        %v566 = vadd.f32 %v564, %v565
        %v567 = vrot.slane %v566, 1
        %v568 = vadd.f32 %v566, %v567
        %569 = vst.msk [vmem:[%s281 + $0x7] sm:$0x1] %vm393, %v568
        %v570 = vld [vmem:[#allocation2 + $0x7] sm:$0x1]
        %v571 = vlaneseq
        %v572 = vshrl.u32 %v571, 7
        %v573 = vsub.s32 0, %v572
        %v574 = vrot.slane %v570, %v573
        %v575 = vmul.f32 %v560, %v574
        %v576 = vsub.f32 1.0, %v575
        %v577 = vmul.f32 %v558, %v576
        %579 = vrot.lane.b32.xlu0 %v574, 96
        %v580 = vpop.permute.xlu0 %579
        %v582 = vmul.f32 %v560, %v580
        %v583 = vadd.f32 %v577, %v582
        %584 = vst.msk [vmem:[%s274] sm:$0xff] %vm307, %v583
        %s585 = sand.u32 %s152, 1
        %s586 = scalar_lea.sflag [#allocation4], %s585
        %s587 = sand.u32 %s152, 1
        %s588 = smul.addr %s587, 8
        %s589 = scalar_lea.vmem [#allocation3], %s588
        %s590 = sand.u32 %s178, 1
        %s591 = scalar_lea.sflag [#allocation6], %s590
        %s592 = sand.u32 %s178, 1
        %s593 = smul.addr %s592, 8
        %s594 = scalar_lea.vmem [#allocation5], %s593
        // Predicated region
        $region41: #{step.1} parent=39 // pred_check
          %p595 = pneg %p162
        $region42: #{step.1} parent=39 // pred_check_branch
          %597 = sbr.rel (%p595) target = $region44
        $region43: #{step.1} parent=39 // pred_region
          %s599 = ssub.s32 128, 128
          %600 = vsyncadd %s586, %s599
          %s601 = smul.addr %s24, 128
          %s602 = scalar_lea.hbm %s5, %s601
          %s604 = sshll.u32 %s589, 4
          %s605 = int_to_ptr.vmem [resolvable:$true] %s604
          %607 = dma.vmem_to_hbm [thread:$0]  %s605, 128, %s602, %s586
        $region44: #{step.1} parent=39 // pred_fallthru
          _
        // Predicated region
        $region45: #{step.1} parent=39 // pred_check
          %p608 = pneg %p188
        $region46: #{step.1} parent=39 // pred_check_branch
          %610 = sbr.rel (%p608) target = $region48
        $region47: #{step.1} parent=39 // pred_region
          %s612 = ssub.s32 128, 128
          %613 = vsyncadd %s591, %s612
          %s614 = smul.addr %s24, 128
          %s615 = scalar_lea.hbm %s6, %s614
          %s617 = sshll.u32 %s594, 4
          %s618 = int_to_ptr.vmem [resolvable:$true] %s617
          %620 = dma.vmem_to_hbm [thread:$0]  %s618, 128, %s615, %s591
        $region48: #{step.1} parent=39 // pred_fallthru
          _
      $region40: #{step.1} parent=5 // pred_fallthru
        _
      %p621 = scmp.le.s32.totalorder 2, %s19
      // Predicated region
      $region49: #{step.1} parent=5 // pred_check
        %p622 = pneg %p621
      $region50: #{step.1} parent=5 // pred_check_branch
        %624 = sbr.rel (%p622) target = $region52
      $region51: #{step.1} parent=5 // pred_region
        %s625 = ssub.s32 %s19, 2
        // Predicated region
        $region53: #{step.1} parent=51 // pred_check
          %p626 = pneg %p168
        $region54: #{step.1} parent=51 // pred_check_branch
          %628 = sbr.rel (%p626) target = $region56
        $region55: #{step.1} parent=51 // pred_region
          %s629 = sand.u32 %s153, 1
          %s630 = scalar_lea.sflag [#allocation4], %s629
          %s631 = sand.u32 %s153, 1
          %s632 = smul.addr %s631, 8
          %s633 = scalar_lea.vmem [#allocation3], %s632
          %634 = dma.done %s630, 128
        $region56: #{step.1} parent=51 // pred_fallthru
          _
        // Predicated region
        $region57: #{step.1} parent=51 // pred_check
          %p635 = pneg %p194
        $region58: #{step.1} parent=51 // pred_check_branch
          %637 = sbr.rel (%p635) target = $region60
        $region59: #{step.1} parent=51 // pred_region
          %s638 = sand.u32 %s179, 1
          %s639 = scalar_lea.sflag [#allocation6], %s638
          %s640 = sand.u32 %s179, 1
          %s641 = smul.addr %s640, 8
          %s642 = scalar_lea.vmem [#allocation5], %s641
          %643 = dma.done %s639, 128
        $region60: #{step.1} parent=51 // pred_fallthru
          _
      $region52: #{step.1} parent=5 // pred_fallthru
        _
    $region6: #{step.1} parent=1 // loop_footer
      %s23 = sadd.s32 1, %s19
    $region7: #{step.1} parent=1 // loop_footer_branch
      %18 = sbr.rel target = $region3
    $region8: #{step.1} parent=1 // loop_exit
      _
    %644 = vsyncpa [#allocation4], 1
    %s645 = scalar_lea.sflag [#allocation4], 1
    %646 = vsyncpa %s645, 1
    %647 = vsyncpa [#allocation6], 1
    %s648 = scalar_lea.sflag [#allocation6], 1
    %649 = vsyncpa %s648, 1

</llo_original>
